<compile_context>
chip_gen: v7x
topology: tpu7x:2x2x1
jax: 0.10.0
libtpu: 0.0.40
codegen_flags: <defaults>
</compile_context>

<pallas_src>
import math
import functools

import jax
import jax.numpy as jnp
from jax import lax
from jax.experimental import pallas as pl
from jax.experimental.pallas import tpu as pltpu


def _favor_kernel(feat_ref, k_ref, v_ref, q_ref, o_ref, kv_ref, *,
                  h_scale, phi_scale, kernel_eps, eps):
    """Grid = (batch, q_tile).

    feat_ref : (m, D)        random-feature matrix (row = feature), shared
    k_ref    : (1, D,  Lk)   keys   (channels-first, full key length)
    v_ref    : (1, Dv, Lk)   values (channels-first, full key length)
    q_ref    : (1, D,  Tq)   queries (one Lq tile)
    o_ref    : (1, Dv, Tq)   output  (one Lq tile, channels-first)
    kv_ref   : (m, Dv+1)     VMEM scratch: [phi_k @ v^T | phi_k @ 1]
    """
    qi = pl.program_id(1)
    scale = h_scale * phi_scale
    dv = o_ref.shape[1]

    feat = feat_ref[...]                                        # (m, D)

    # ---- once per batch element: build the (m, Dv+1) kv matrix -------------
    @pl.when(qi == 0)
    def _():
        keys = k_ref[0]                                         # (D, Lk)
        vals = v_ref[0].astype(jnp.float32)                     # (Dv, Lk)
        proj_k = jnp.dot(feat, keys,
                         preferred_element_type=jnp.float32)    # (m, Lk)
        phi_k = jnp.maximum(proj_k, 0.0) * scale + kernel_eps   # (m, Lk)
        ones = jnp.ones((1, vals.shape[1]), jnp.float32)
        vals_aug = jnp.concatenate([vals, ones], axis=0)        # (Dv+1, Lk)
        # Contract over Lk (last dim of both) -> (m, Dv+1); the last column is
        # sum_k phi_k (the normalizer), fused into the same MXU op.
        kv_ref[...] = lax.dot_general(
            phi_k, vals_aug, (((1,), (1,)), ((), ())),
            preferred_element_type=jnp.float32)

    # ---- every grid step: one Lq tile ---------------------------------------
    qrys = q_ref[0]                                             # (D, Tq)
    proj_q = jnp.dot(feat, qrys,
                     preferred_element_type=jnp.float32)        # (m, Tq)
    phi_q = jnp.maximum(proj_q, 0.0) * scale + kernel_eps       # (m, Tq)

    # Contract over m (first dim of both) -> (Dv+1, Tq); row Dv is the norm.
    out_aug = lax.dot_general(
        kv_ref[...], phi_q, (((0,), (0,)), ((), ())),
        preferred_element_type=jnp.float32)                     # (Dv+1, Tq)

    out = out_aug[:dv]                                          # (Dv, Tq)
    norm = out_aug[dv:dv + 1]                                   # (1, Tq)
    if eps != 0.0:
        denom = norm + 2.0 * eps * (jnp.abs(norm) <= eps).astype(norm.dtype)
    else:
        denom = norm
    inv = 1.0 / denom                                           # (1, Tq)
    o_ref[0] = (out * inv).astype(o_ref.dtype)


def _pick_q_tile(lq, max_tile=1024):
    """Largest tile <= max_tile that is a multiple of 128 and divides Lq;
    fall back to the full length (full-extent blocks are always legal)."""
    if lq <= max_tile:
        return lq
    t = (max_tile // 128) * 128
    while t >= 128:
        if lq % t == 0:
            return t
        t -= 128
    return lq


def favor_forward(keys, values, queries, features, *,
                  m, h=None, eps=0.0, kernel_eps=1e-3, q_tile_max=1024):
    """Non-causal FAVOR forward.

    keys    : (B, D,  *key_locs)
    values  : (B, Dv, *key_locs)
    queries : (B, D,  *q_locs)
    features: (m, D)   (already transposed, as in the torch module)
    returns : (B, Dv, *q_locs)
    """
    q_locs = queries.shape[2:]
    B, D = keys.shape[:2]
    Dv = values.shape[1]

    # Flatten locations only — keep channels-first (no HBM transpose passes).
    k = keys.reshape(B, D, -1)          # (B, D,  Lk)
    v = values.reshape(B, Dv, -1)       # (B, Dv, Lk)
    q = queries.reshape(B, D, -1)       # (B, D,  Lq)
    Lk = k.shape[2]
    Lq = q.shape[2]

    q_tile = _pick_q_tile(Lq, q_tile_max)
    nq = Lq // q_tile

    sqrt_m = math.sqrt(m)
    h_scale = float(h) if h is not None else sqrt_m   # default h(x) = sqrt(m)
    phi_scale = 1.0 / sqrt_m
    # TODO(synk): module allows a list of feature maps `f` and a callable `h`;
    # only the default single-ReLU / constant-h case is implemented here.

    kernel = functools.partial(
        _favor_kernel,
        h_scale=h_scale, phi_scale=phi_scale,
        kernel_eps=kernel_eps, eps=float(eps))

    # Scoped VMEM sized from the actual blocks (inputs are double-buffered).
    block_bytes = 4 * (m * D
                       + 2 * (D + Dv) * Lk
                       + 2 * D * q_tile
                       + 2 * Dv * q_tile
                       + m * (Dv + 1))
    vmem_limit = int(min(max(3 * block_bytes, 32 * 1024 * 1024),
                         64 * 1024 * 1024))

    out = pl.pallas_call(
        kernel,
        out_shape=jax.ShapeDtypeStruct((B, Dv, Lq), jnp.float32),
        grid_spec=pltpu.PrefetchScalarGridSpec(
            num_scalar_prefetch=0,
            grid=(B, nq),
            in_specs=[
                pl.BlockSpec((m, D), lambda b, qi: (0, 0)),           # features
                pl.BlockSpec((1, D, Lk), lambda b, qi: (b, 0, 0)),    # keys
                pl.BlockSpec((1, Dv, Lk), lambda b, qi: (b, 0, 0)),   # values
                pl.BlockSpec((1, D, q_tile), lambda b, qi: (b, 0, qi)),  # queries
            ],
            out_specs=pl.BlockSpec((1, Dv, q_tile), lambda b, qi: (b, 0, qi)),
            scratch_shapes=[pltpu.VMEM((m, Dv + 1), jnp.float32)],
        ),
        compiler_params=pltpu.CompilerParams(
            dimension_semantics=("parallel", "arbitrary"),
            vmem_limit_bytes=vmem_limit),
    )(features, k, v, q)

    # (B, Dv, Lq) is already channels-first — reshape only, no transpose.
    return out.reshape(B, Dv, *q_locs)


def favor_reference(keys, values, queries, features, *,
                    m, h=None, eps=0.0, kernel_eps=1e-3):
    """Pure-JAX reference mirroring the torch module (non-causal)."""
    q_locs = queries.shape[2:]
    B, D = keys.shape[:2]
    Dv = values.shape[1]
    k = jnp.transpose(keys.reshape(B, D, -1), (0, 2, 1))
    v = jnp.transpose(values.reshape(B, Dv, -1), (0, 2, 1))
    q = jnp.transpose(queries.reshape(B, D, -1), (0, 2, 1))

    sqrt_m = math.sqrt(m)
    h_scale = float(h) if h is not None else sqrt_m
    phi_scale = 1.0 / sqrt_m

    def phi(x):
        proj = jnp.matmul(x, features.T)
        return jax.nn.relu(proj) * h_scale * phi_scale + kernel_eps

    phi_k = phi(k)
    phi_q = phi(q)
    out = jnp.matmul(phi_q, jnp.matmul(jnp.transpose(phi_k, (0, 2, 1)), v))
    norm = jnp.matmul(phi_q, jnp.sum(phi_k, axis=1)[..., None])
    out = out / (norm + 2 * eps * (jnp.abs(norm) <= eps).astype(norm.dtype))
    out = jnp.transpose(out, (0, 2, 1)).reshape(B, Dv, *q_locs)
    return out


if __name__ == "__main__":
    # Small, module-consistent shapes; Lq chosen so the Lq-tile grid axis is
    # actually exercised (q_tile_max=128 -> 2 query tiles per batch).
    B = 2
    key_dim = 32          # keys/queries channel dim
    value_dim = 8         # values channel dim
    m = 32                # number of random features (m <= key_dim, orthonormal)
    key_locs = (16, 16)   # spatial locations for keys/values  (Lk = 256)
    q_locs = (16, 16)     # spatial locations for queries      (Lq = 256)

    key = jax.random.PRNGKey(0)
    k_key, v_key, q_key, f_key = jax.random.split(key, 4)

    keys = jax.random.normal(k_key, (B, key_dim) + key_locs, dtype=jnp.float32)
    values = jax.random.normal(v_key, (B, value_dim) + key_locs, dtype=jnp.float32)
    queries = jax.random.normal(q_key, (B, key_dim) + q_locs, dtype=jnp.float32)

    # Deterministic orthonormal random features, as in FAVOR.__init__/features():
    # randn(key_dim, m) -> QR -> Q (key_dim, m) -> transpose -> (m, key_dim).
    raw = jax.random.normal(f_key, (key_dim, m), dtype=jnp.float32)
    q_mat, _ = jnp.linalg.qr(raw)            # (key_dim, m)
    features = q_mat.T                        # (m, key_dim)

    out = favor_forward(keys, values, queries, features,
                        m=m, eps=0.0, kernel_eps=1e-3, q_tile_max=128)
    out = jax.block_until_ready(out)

    ref = favor_reference(keys, values, queries, features,
                          m=m, eps=0.0, kernel_eps=1e-3)
    assert out.shape == (B, value_dim) + q_locs
    assert jnp.allclose(out, ref, atol=1e-3, rtol=1e-3), (
        float(jnp.max(jnp.abs(out - ref))))

    # TODO(synk): causal=True path (cumulative-sum prefix attention) not
    # implemented; module default is causal=False.
    print("KERNEL_OK")
</pallas_src>

<mosaic_0001>
module attributes {stable_mosaic.version = 11 : i64} {
  func.func @_favor_kernel(%arg0: i32, %arg1: i32, %arg2: memref<32x32xf32, #tpu.memory_space<vmem>>, %arg3: memref<1x32x256xf32, #tpu.memory_space<vmem>>, %arg4: memref<1x8x256xf32, #tpu.memory_space<vmem>>, %arg5: memref<1x32x128xf32, #tpu.memory_space<vmem>>, %arg6: memref<1x8x128xf32, #tpu.memory_space<vmem>>, %arg7: memref<32x9xf32, #tpu.memory_space<vmem>>) attributes {dimension_semantics = [#tpu.dimension_semantics<parallel>, #tpu.dimension_semantics<arbitrary>], iteration_bounds = array<i64: 2, 2>, scalar_prefetch = 0 : i64, scratch_operands = 1 : i64, tpu.core_type = #tpu.core_type<tc>, window_params = [{pipeline_mode = #tpu.pipeline_mode<synchronous>, transform_indices = @transform_0, window_bounds = array<i64: 32, 32>}, {transform_indices = @transform_1, window_bounds = array<i64: 1, 32, 256>}, {transform_indices = @transform_2, window_bounds = array<i64: 1, 8, 256>}, {transform_indices = @transform_3, window_bounds = array<i64: 1, 32, 128>}, {transform_indices = @transform_4, window_bounds = array<i64: 1, 8, 128>}]} {
    %c0 = arith.constant 0 : index
    %c0_0 = arith.constant 0 : index
    %0 = vector.load %arg2[%c0, %c0_0] : memref<32x32xf32, #tpu.memory_space<vmem>>, vector<32x32xf32>
    %c0_i32 = arith.constant 0 : i32
    %1 = arith.cmpi eq, %arg1, %c0_i32 : i32
    %2 = arith.extui %1 : i1 to i32
    %c0_i32_1 = arith.constant 0 : i32
    %3 = arith.cmpi ne, %2, %c0_i32_1 : i32
    scf.if %3 {
      %c0_15 = arith.constant 0 : index
      %c0_16 = arith.constant 0 : index
      %c0_17 = arith.constant 0 : index
      %24 = vector.load %arg3[%c0_15, %c0_16, %c0_17] : memref<1x32x256xf32, #tpu.memory_space<vmem>>, vector<1x32x256xf32>
      %25 = vector.shape_cast %24 : vector<1x32x256xf32> to vector<32x256xf32>
      %c0_18 = arith.constant 0 : index
      %c0_19 = arith.constant 0 : index
      %c0_20 = arith.constant 0 : index
      %26 = vector.load %arg4[%c0_18, %c0_19, %c0_20] : memref<1x8x256xf32, #tpu.memory_space<vmem>>, vector<1x8x256xf32>
      %27 = vector.shape_cast %26 : vector<1x8x256xf32> to vector<8x256xf32>
      %cst_21 = arith.constant dense<0.000000e+00> : vector<32x256xf32>
      %28 = tpu.matmul %0, %25, %cst_21 {dimension_numbers = #tpu.dot_dimension_numbers<[1], [0], [0], [1], [0, 0, 1, 1], [], []>} : vector<32x32xf32>, vector<32x256xf32>, vector<32x256xf32> -> vector<32x256xf32>
      %cst_22 = arith.constant 0.000000e+00 : f32
      %29 = vector.broadcast %cst_22 : f32 to vector<32x256xf32>
      %30 = arith.maximumf %28, %29 : vector<32x256xf32>
      %cst_23 = arith.constant 1.000000e+00 : f32
      %31 = vector.broadcast %cst_23 : f32 to vector<32x256xf32>
      %32 = arith.mulf %30, %31 : vector<32x256xf32>
      %cst_24 = arith.constant 1.000000e-03 : f32
      %33 = vector.broadcast %cst_24 : f32 to vector<32x256xf32>
      %34 = arith.addf %32, %33 : vector<32x256xf32>
      %cst_25 = arith.constant 1.000000e+00 : f32
      %35 = vector.broadcast %cst_25 : f32 to vector<1x256xf32>
      %36 = tpu.concatenate %27, %35 in 0 : vector<8x256xf32>, vector<1x256xf32> -> vector<9x256xf32>
      %cst_26 = arith.constant dense<0.000000e+00> : vector<32x9xf32>
      %37 = tpu.matmul %34, %36, %cst_26 {dimension_numbers = #tpu.dot_dimension_numbers<[1], [1], [0], [0], [0, 0, 1, 0], [], []>} : vector<32x256xf32>, vector<9x256xf32>, vector<32x9xf32> -> vector<32x9xf32>
      %c0_27 = arith.constant 0 : index
      %c0_28 = arith.constant 0 : index
      %38 = vector.load %arg7[%c0_27, %c0_28] : memref<32x9xf32, #tpu.memory_space<vmem>>, vector<32x9xf32>
      tpu.vector_store %arg7[%c0_27, %c0_28], %37 {strides = array<i32>} : memref<32x9xf32, #tpu.memory_space<vmem>>, vector<32x9xf32>,
    } else {
    }
    %c0_2 = arith.constant 0 : index
    %c0_3 = arith.constant 0 : index
    %c0_4 = arith.constant 0 : index
    %4 = vector.load %arg5[%c0_2, %c0_3, %c0_4] : memref<1x32x128xf32, #tpu.memory_space<vmem>>, vector<1x32x128xf32>
    %5 = vector.shape_cast %4 : vector<1x32x128xf32> to vector<32x128xf32>
    %cst = arith.constant dense<0.000000e+00> : vector<32x128xf32>
    %6 = tpu.matmul %0, %5, %cst {dimension_numbers = #tpu.dot_dimension_numbers<[1], [0], [0], [1], [0, 0, 1, 1], [], []>} : vector<32x32xf32>, vector<32x128xf32>, vector<32x128xf32> -> vector<32x128xf32>
    %cst_5 = arith.constant 0.000000e+00 : f32
    %7 = vector.broadcast %cst_5 : f32 to vector<32x128xf32>
    %8 = arith.maximumf %6, %7 : vector<32x128xf32>
    %cst_6 = arith.constant 1.000000e+00 : f32
    %9 = vector.broadcast %cst_6 : f32 to vector<32x128xf32>
    %10 = arith.mulf %8, %9 : vector<32x128xf32>
    %cst_7 = arith.constant 1.000000e-03 : f32
    %11 = vector.broadcast %cst_7 : f32 to vector<32x128xf32>
    %12 = arith.addf %10, %11 : vector<32x128xf32>
    %c0_8 = arith.constant 0 : index
    %c0_9 = arith.constant 0 : index
    %13 = vector.load %arg7[%c0_8, %c0_9] : memref<32x9xf32, #tpu.memory_space<vmem>>, vector<32x9xf32>
    %cst_10 = arith.constant dense<0.000000e+00> : vector<9x128xf32>
    %14 = tpu.matmul %13, %12, %cst_10 {dimension_numbers = #tpu.dot_dimension_numbers<[0], [0], [1], [1], [0, 1, 1, 1], [], []>} : vector<32x9xf32>, vector<32x128xf32>, vector<9x128xf32> -> vector<9x128xf32>
    %15 = vector.extract_strided_slice %14 {offsets = [0, 0], sizes = [8, 128], strides = [1, 1]} : vector<9x128xf32> to vector<8x128xf32>
    %16 = vector.extract_strided_slice %14 {offsets = [8, 0], sizes = [1, 128], strides = [1, 1]} : vector<9x128xf32> to vector<1x128xf32>
    %cst_11 = arith.constant 1.000000e+00 : f32
    %17 = vector.broadcast %cst_11 : f32 to vector<1x128xf32>
    %18 = arith.divf %17, %16 : vector<1x128xf32>
    %19 = vector.broadcast %18 : vector<1x128xf32> to vector<8x128xf32>
    %20 = arith.mulf %15, %19 : vector<8x128xf32>
    %c0_12 = arith.constant 0 : index
    %c0_13 = arith.constant 0 : index
    %c0_14 = arith.constant 0 : index
    %21 = vector.load %arg6[%c0_12, %c0_13, %c0_14] : memref<1x8x128xf32, #tpu.memory_space<vmem>>, vector<1x8x128xf32>
    %22 = vector.shape_cast %21 : vector<1x8x128xf32> to vector<8x128xf32>
    %23 = vector.shape_cast %20 : vector<8x128xf32> to vector<1x8x128xf32>
    tpu.vector_store %arg6[%c0_12, %c0_13, %c0_14], %23 {strides = array<i32>} : memref<1x8x128xf32, #tpu.memory_space<vmem>>, vector<1x8x128xf32>,
    return
  }
  func.func @transform_0(%arg0: i32, %arg1: i32) -> (i32, i32) {
    %c0_i32 = arith.constant 0 : i32
    %c0_i32_0 = arith.constant 0 : i32
    %c0_i32_1 = arith.constant 0 : i32
    return %c0_i32, %c0_i32_0 : i32, i32
  }
  func.func @transform_1(%arg0: i32, %arg1: i32) -> (i32, i32, i32) {
    %c0_i32 = arith.constant 0 : i32
    %c0_i32_0 = arith.constant 0 : i32
    %c0_i32_1 = arith.constant 0 : i32
    return %arg0, %c0_i32, %c0_i32_0 : i32, i32, i32
  }
  func.func @transform_2(%arg0: i32, %arg1: i32) -> (i32, i32, i32) {
    %c0_i32 = arith.constant 0 : i32
    %c0_i32_0 = arith.constant 0 : i32
    %c0_i32_1 = arith.constant 0 : i32
    return %arg0, %c0_i32, %c0_i32_0 : i32, i32, i32
  }
  func.func @transform_3(%arg0: i32, %arg1: i32) -> (i32, i32, i32) {
    %c0_i32 = arith.constant 0 : i32
    %c0_i32_0 = arith.constant 0 : i32
    return %arg0, %c0_i32, %arg1 : i32, i32, i32
  }
  func.func @transform_4(%arg0: i32, %arg1: i32) -> (i32, i32, i32) {
    %c0_i32 = arith.constant 0 : i32
    %c0_i32_0 = arith.constant 0 : i32
    return %arg0, %c0_i32, %arg1 : i32, i32, i32
  }
}

</mosaic_0001>

<llo_original>
// kernel: tpu_custom_call.1
$region0: #{tpu_custom_call.1}
  #allocation0 [shape = 'u32[]', space=smem, size = 0x4, offset = 0x4, fixed_abs, tag = 'smem constant byte address 0x4 - core index']
  #allocation1 [shape = 'u32[144,128]{1,0:T(1,128)}', space=vmem, size = 0x12000, scoped, tag = 'internal scratch']
  #allocation2 [shape = 'f32[32,9]{1,0:T(8,128)}', space=vmem, size = 0x4000, scoped, tag = 'scratch operand']
  %s0 = inlined_call_operand.hbm [shape: f32[32,32], index: 0, kind: input, shape index: {}]
  %s1 = inlined_call_operand.hbm [shape: f32[2,32,256], index: 1, kind: input, shape index: {}]
  %s2 = inlined_call_operand.hbm [shape: f32[2,8,256], index: 2, kind: input, shape index: {}]
  %s3 = inlined_call_operand.hbm [shape: f32[2,32,256], index: 3, kind: input, shape index: {}]
  %s4 = inlined_call_operand.hbm [shape: f32[2,8,256], index: 4, kind: output, shape index: {}]
  %s5 = sld [smem:[#allocation0]]
  $region69: #{tpu_custom_call.1} parent=0
    _
  %s7 = ssub.s32 1, %s5
  %s8 = scalar_select 0, %s7, %s5
  $region1: #{tpu_custom_call.1} parent=0
    #allocation3 [shape = 'u8[16384]{0}', space=vmem, size = 0x4000, scoped, tag = 'input window, operand 0, single buffered']
    #allocation4 [shape = 's32[2]{0}', space=sflag, size = 0x8, scoped, tag = 'scoped memory for tpu_custom_call.1']
    #allocation5 [shape = 's32[2]{0}', space=sflag, size = 0x8, scoped, tag = 'scoped memory for tpu_custom_call.1']
    #allocation6 [shape = 'u8[65536]{0}', space=vmem, size = 0x10000, scoped, tag = 'input window, operand 1']
    #allocation7 [shape = 's32[2]{0}', space=sflag, size = 0x8, scoped, tag = 'scoped memory for tpu_custom_call.1']
    #allocation8 [shape = 'u8[16384]{0}', space=vmem, size = 0x4000, scoped, tag = 'input window, operand 2']
    #allocation9 [shape = 'u8[32768]{0}', space=vmem, size = 0x8000, scoped, tag = 'input window, operand 3']
    #allocation10 [shape = 's32[2]{0}', space=sflag, size = 0x8, scoped, tag = 'scoped memory for tpu_custom_call.1']
    #allocation11 [shape = 'u8[8192]{0}', space=vmem, size = 0x2000, scoped, tag = 'output window, operand 0']
    %9 = vsyncpa [#allocation4], 0
    %10 = vsyncpa [#allocation7], 0
    %s11 = scalar_lea.sflag [#allocation7], 1
    %12 = vsyncpa %s11, 0
    %13 = vsyncpa [#allocation10], 0
    %s14 = scalar_lea.sflag [#allocation10], 1
    %15 = vsyncpa %s14, 0
    %16 = vsyncpa [#allocation5], 0
    %s17 = scalar_lea.sflag [#allocation5], 1
    %18 = vsyncpa %s17, 0
    loop: start=0, step=1, limit=6
    $region2: #{tpu_custom_call.1} parent=1 // loop_pre_header
      _
    $region3: #{tpu_custom_call.1} parent=1 // loop_header
      %s20 = sphi 0, %s24
      %p21 = scmp.ge.s32.totalorder %s20, 6
      %s27 = sphi 0, %s39
      %s28 = sphi 0, %s35
      %s29 = sphi 0, %s27
      %s30 = sphi 0, %s28
      %s31 = sphi 0, %s29
      %s32 = sphi 0, %s30
      %s40 = sphi 0, %s40
      %s42 = sphi 0, %s40
      %s43 = sphi 0, %s42
      %s57 = sphi 0, %s43
      %s63 = sphi 0, %s65
      %s66 = sphi 0, %s63
      %s67 = sphi 0, %s66
      %s83 = sphi 0, %s67
      %s89 = sphi 0, %s91
      %s92 = sphi 0, %s89
      %s93 = sphi 0, %s92
      %s109 = sphi 0, %s93
      %s117 = sphi 0, %s119
      %s120 = sphi 0, %s117
      %s121 = sphi 0, %s120
      %s137 = sphi 0, %s121
      %s145 = sphi 0, %s147
      %s148 = sphi 0, %s145
      %s149 = sphi 0, %s148
      %s165 = sphi 0, %s149
    $region4: #{tpu_custom_call.1} parent=1 // loop_header_branch
      %23 = sbr.rel (%p21) target = $region8
    $region5: #{tpu_custom_call.1} parent=1 // loop_body
      %s25 = ssub.s32 %s20, 1
      %s26 = ssub.s32 %s20, 2
      %s33 = sadd.s32 1, %s28
      %p34 = scmp.ge.s32.totalorder %s33, 2
      %s35 = scalar_select %p34, 0, %s33
      %s36 = sadd.s32 1, %s27
      %s37 = scalar_select %p34, %s36, %s27
      %p38 = scmp.ge.s32.totalorder %s37, 2
      %s39 = scalar_select %p38, 0, %s37
      %s41 = sadd.s32 %s40, 1
      %p44 = scmp.eq.s32.totalorder %s20, 3
      %p45 = scmp.ne.s32.totalorder %s40, %s42
      %p46 = scmp.eq.s32.totalorder %s20, 0
      %p47 = por %p45, %p46
      %p48 = scmp.ne.s32.totalorder %s40, %s42
      %p49 = scmp.eq.s32.totalorder %s25, 3
      %p50 = por %p48, %p49
      %p51 = scmp.ne.s32.totalorder %s42, %s43
      %p52 = scmp.eq.s32.totalorder %s25, 0
      %p53 = por %p51, %p52
      %p54 = scmp.ne.s32.totalorder %s42, %s43
      %p55 = scmp.eq.s32.totalorder %s26, 3
      %p56 = por %p54, %p55
      %p58 = scmp.ne.s32.totalorder %s43, %s57
      %p59 = scmp.eq.s32.totalorder %s26, 0
      %p60 = por %p58, %p59
      %s61 = ssub.s32 %s27, %s39
      %p62 = scmp.eq.s32.totalorder %s61, 0
      %s64 = sadd.s32 %s63, 1
      %s65 = scalar_select %p62, %s63, %s64
      %p68 = pneg %p62
      %p69 = scmp.eq.s32.totalorder %s20, 3
      %p70 = por %p68, %p69
      %p71 = scmp.ne.s32.totalorder %s63, %s66
      %p72 = scmp.eq.s32.totalorder %s20, 0
      %p73 = por %p71, %p72
      %p74 = scmp.ne.s32.totalorder %s63, %s66
      %p75 = scmp.eq.s32.totalorder %s25, 3
      %p76 = por %p74, %p75
      %p77 = scmp.ne.s32.totalorder %s66, %s67
      %p78 = scmp.eq.s32.totalorder %s25, 0
      %p79 = por %p77, %p78
      %p80 = scmp.ne.s32.totalorder %s66, %s67
      %p81 = scmp.eq.s32.totalorder %s26, 3
      %p82 = por %p80, %p81
      %p84 = scmp.ne.s32.totalorder %s67, %s83
      %p85 = scmp.eq.s32.totalorder %s26, 0
      %p86 = por %p84, %p85
      %s87 = ssub.s32 %s27, %s39
      %p88 = scmp.eq.s32.totalorder %s87, 0
      %s90 = sadd.s32 %s89, 1
      %s91 = scalar_select %p88, %s89, %s90
      %p94 = pneg %p88
      %p95 = scmp.eq.s32.totalorder %s20, 3
      %p96 = por %p94, %p95
      %p97 = scmp.ne.s32.totalorder %s89, %s92
      %p98 = scmp.eq.s32.totalorder %s20, 0
      %p99 = por %p97, %p98
      %p100 = scmp.ne.s32.totalorder %s89, %s92
      %p101 = scmp.eq.s32.totalorder %s25, 3
      %p102 = por %p100, %p101
      %p103 = scmp.ne.s32.totalorder %s92, %s93
      %p104 = scmp.eq.s32.totalorder %s25, 0
      %p105 = por %p103, %p104
      %p106 = scmp.ne.s32.totalorder %s92, %s93
      %p107 = scmp.eq.s32.totalorder %s26, 3
      %p108 = por %p106, %p107
      %p110 = scmp.ne.s32.totalorder %s93, %s109
      %p111 = scmp.eq.s32.totalorder %s26, 0
      %p112 = por %p110, %p111
      %s113 = ssub.s32 %s27, %s39
      %s114 = ssub.s32 %s28, %s35
      %s115 = sor.u32 %s113, %s114
      %p116 = scmp.eq.s32.totalorder %s115, 0
      %s118 = sadd.s32 %s117, 1
      %s119 = scalar_select %p116, %s117, %s118
      %p122 = pneg %p116
      %p123 = scmp.eq.s32.totalorder %s20, 3
      %p124 = por %p122, %p123
      %p125 = scmp.ne.s32.totalorder %s117, %s120
      %p126 = scmp.eq.s32.totalorder %s20, 0
      %p127 = por %p125, %p126
      %p128 = scmp.ne.s32.totalorder %s117, %s120
      %p129 = scmp.eq.s32.totalorder %s25, 3
      %p130 = por %p128, %p129
      %p131 = scmp.ne.s32.totalorder %s120, %s121
      %p132 = scmp.eq.s32.totalorder %s25, 0
      %p133 = por %p131, %p132
      %p134 = scmp.ne.s32.totalorder %s120, %s121
      %p135 = scmp.eq.s32.totalorder %s26, 3
      %p136 = por %p134, %p135
      %p138 = scmp.ne.s32.totalorder %s121, %s137
      %p139 = scmp.eq.s32.totalorder %s26, 0
      %p140 = por %p138, %p139
      %s141 = ssub.s32 %s27, %s39
      %s142 = ssub.s32 %s28, %s35
      %s143 = sor.u32 %s141, %s142
      %p144 = scmp.eq.s32.totalorder %s143, 0
      %s146 = sadd.s32 %s145, 1
      %s147 = scalar_select %p144, %s145, %s146
      %p150 = pneg %p144
      %p151 = scmp.eq.s32.totalorder %s20, 3
      %p152 = por %p150, %p151
      %p153 = scmp.ne.s32.totalorder %s145, %s148
      %p154 = scmp.eq.s32.totalorder %s20, 0
      %p155 = por %p153, %p154
      %p156 = scmp.ne.s32.totalorder %s145, %s148
      %p157 = scmp.eq.s32.totalorder %s25, 3
      %p158 = por %p156, %p157
      %p159 = scmp.ne.s32.totalorder %s148, %s149
      %p160 = scmp.eq.s32.totalorder %s25, 0
      %p161 = por %p159, %p160
      %p162 = scmp.ne.s32.totalorder %s148, %s149
      %p163 = scmp.eq.s32.totalorder %s26, 3
      %p164 = por %p162, %p163
      %p166 = scmp.ne.s32.totalorder %s149, %s165
      %p167 = scmp.eq.s32.totalorder %s26, 0
      %p168 = por %p166, %p167
      %p169 = scmp.le.s32.totalorder 1, %s20
      %p170 = scmp.lt.s32.totalorder %s20, 5
      %p171 = pnand %p169, %p170
      %p172 = pneg %p171
      // Predicated region
      $region9: #{tpu_custom_call.1} parent=5 // pred_check
        _
      $region10: #{tpu_custom_call.1} parent=5 // pred_check_branch
        %174 = sbr.rel (%p171) target = $region12
      $region11: #{tpu_custom_call.1} parent=5 // pred_region
        %s175 = ssub.s32 %s20, 1
        // Predicated region
        $region13: #{tpu_custom_call.1} parent=11 // pred_check
          %p176 = pneg %p53
        $region14: #{tpu_custom_call.1} parent=11 // pred_check_branch
          %178 = sbr.rel (%p176) target = $region16
        $region15: #{tpu_custom_call.1} parent=11 // pred_region
          %s180 = ssub.s32 512, 512
          %181 = vsyncadd [#allocation4], %s180
          %s182 = sshll.u32 [#allocation3], 4
          %s183 = int_to_ptr.vmem [resolvable:$true] %s182
          %188 = dma.hbm_to_vmem [thread:$0]  %s0, 512, %s183, [#allocation4], 128, 128, 8
        $region16: #{tpu_custom_call.1} parent=11 // pred_fallthru
          _
      $region12: #{tpu_custom_call.1} parent=5 // pred_fallthru
        _
      %p189 = scmp.lt.s32.totalorder %s20, 4
      // Predicated region
      $region17: #{tpu_custom_call.1} parent=5 // pred_check
        %p190 = pneg %p189
      $region18: #{tpu_custom_call.1} parent=5 // pred_check_branch
        %192 = sbr.rel (%p190) target = $region20
      $region19: #{tpu_custom_call.1} parent=5 // pred_region
        // Predicated region
        $region21: #{tpu_custom_call.1} parent=19 // pred_check
          %p193 = pneg %p73
        $region22: #{tpu_custom_call.1} parent=19 // pred_check_branch
          %195 = sbr.rel (%p193) target = $region24
        $region23: #{tpu_custom_call.1} parent=19 // pred_region
          %s196 = sand.u32 %s20, 1
          %s197 = scalar_lea.sflag [#allocation7], %s196
          %s198 = sand.u32 %s63, 1
          %s199 = smul.addr %s198, 64
          %s200 = scalar_lea.vmem [#allocation6], %s199
          %s202 = ssub.s32 1024, 1024
          %203 = vsyncadd %s197, %s202
          %s204 = smul.addr %s27, 8
          %s205 = smul.addr %s204, 128
          %s206 = scalar_lea.hbm %s1, %s205
          %s207 = sshll.u32 %s200, 4
          %s208 = int_to_ptr.vmem [resolvable:$true] %s207
          %213 = dma.hbm_to_vmem [thread:$0]  %s206, 1024, %s208, %s197, 256, 256, 16
        $region24: #{tpu_custom_call.1} parent=19 // pred_fallthru
          _
        // Predicated region
        $region25: #{tpu_custom_call.1} parent=19 // pred_check
          %p214 = pneg %p99
        $region26: #{tpu_custom_call.1} parent=19 // pred_check_branch
          %216 = sbr.rel (%p214) target = $region28
        $region27: #{tpu_custom_call.1} parent=19 // pred_region
          %s217 = sand.u32 %s20, 1
          %s218 = scalar_lea.sflag [#allocation7], %s217
          %s219 = sand.u32 %s89, 1
          %s220 = smul.addr %s219, 16
          %s221 = scalar_lea.vmem [#allocation8], %s220
          %s223 = ssub.s32 256, 256
          %224 = vsyncadd %s218, %s223
          %s225 = smul.addr %s27, 2
          %s226 = smul.addr %s225, 128
          %s227 = scalar_lea.hbm %s2, %s226
          %s229 = sshll.u32 %s221, 4
          %s230 = int_to_ptr.vmem [resolvable:$true] %s229
          %232 = dma.hbm_to_vmem [thread:$0]  %s227, 256, %s230, %s218
        $region28: #{tpu_custom_call.1} parent=19 // pred_fallthru
          _
        // Predicated region
        $region29: #{tpu_custom_call.1} parent=19 // pred_check
          %p233 = pneg %p127
        $region30: #{tpu_custom_call.1} parent=19 // pred_check_branch
          %235 = sbr.rel (%p233) target = $region32
        $region31: #{tpu_custom_call.1} parent=19 // pred_region
          %s236 = sand.u32 %s117, 1
          %s237 = scalar_lea.sflag [#allocation10], %s236
          %s238 = sand.u32 %s117, 1
          %s239 = smul.addr %s238, 32
          %s240 = scalar_lea.vmem [#allocation9], %s239
          %s242 = ssub.s32 512, 512
          %243 = vsyncadd %s237, %s242
          %s244 = smul.addr %s27, 8
          %s245 = sadd.s32 %s28, %s244
          %s246 = smul.addr %s245, 128
          %s247 = scalar_lea.hbm %s3, %s246
          %s248 = sshll.u32 %s240, 4
          %s249 = int_to_ptr.vmem [resolvable:$true] %s248
          %254 = dma.hbm_to_vmem [thread:$0]  %s247, 512, %s249, %s237, 256, 128, 8
        $region32: #{tpu_custom_call.1} parent=19 // pred_fallthru
          _
      $region20: #{tpu_custom_call.1} parent=5 // pred_fallthru
        _
      %p255 = scmp.le.s32.totalorder 1, %s20
      %p256 = scmp.lt.s32.totalorder %s20, 5
      %p257 = pnand %p255, %p256
      %p258 = pneg %p257
      // Predicated region
      $region33: #{tpu_custom_call.1} parent=5 // pred_check
        _
      $region34: #{tpu_custom_call.1} parent=5 // pred_check_branch
        %260 = sbr.rel (%p257) target = $region36
      $region35: #{tpu_custom_call.1} parent=5 // pred_region
        %s261 = ssub.s32 %s20, 1
        // Predicated region
        $region37: #{tpu_custom_call.1} parent=35 // pred_check
          %p262 = pneg %p53
        $region38: #{tpu_custom_call.1} parent=35 // pred_check_branch
          %264 = sbr.rel (%p262) target = $region40
        $region39: #{tpu_custom_call.1} parent=35 // pred_region
          %265 = dma.done [#allocation4], 512
        $region40: #{tpu_custom_call.1} parent=35 // pred_fallthru
          _
        %s266 = sand.u32 %s25, 1
        %s267 = scalar_lea.sflag [#allocation7], %s266
        %s268 = sand.u32 %s66, 1
        %s269 = smul.addr %s268, 64
        %s270 = scalar_lea.vmem [#allocation6], %s269
        // Predicated region
        $region41: #{tpu_custom_call.1} parent=35 // pred_check
          %p271 = pneg %p79
        $region42: #{tpu_custom_call.1} parent=35 // pred_check_branch
          %273 = sbr.rel (%p271) target = $region44
        $region43: #{tpu_custom_call.1} parent=35 // pred_region
          %274 = dma.done %s267, 1024
        $region44: #{tpu_custom_call.1} parent=35 // pred_fallthru
          _
        %s275 = sand.u32 %s25, 1
        %s276 = scalar_lea.sflag [#allocation7], %s275
        %s277 = sand.u32 %s92, 1
        %s278 = smul.addr %s277, 16
        %s279 = scalar_lea.vmem [#allocation8], %s278
        // Predicated region
        $region45: #{tpu_custom_call.1} parent=35 // pred_check
          %p280 = pneg %p105
        $region46: #{tpu_custom_call.1} parent=35 // pred_check_branch
          %282 = sbr.rel (%p280) target = $region48
        $region47: #{tpu_custom_call.1} parent=35 // pred_region
          %283 = dma.done %s276, 256
        $region48: #{tpu_custom_call.1} parent=35 // pred_fallthru
          _
        %s284 = sand.u32 %s120, 1
        %s285 = scalar_lea.sflag [#allocation10], %s284
        %s286 = sand.u32 %s120, 1
        %s287 = smul.addr %s286, 32
        %s288 = scalar_lea.vmem [#allocation9], %s287
        // Predicated region
        $region49: #{tpu_custom_call.1} parent=35 // pred_check
          %p289 = pneg %p133
        $region50: #{tpu_custom_call.1} parent=35 // pred_check_branch
          %291 = sbr.rel (%p289) target = $region52
        $region51: #{tpu_custom_call.1} parent=35 // pred_region
          %292 = dma.done %s285, 512
        $region52: #{tpu_custom_call.1} parent=35 // pred_fallthru
          _
        %p293 = pneg %p53
        %p294 = pneg %p50
        %s295 = sand.u32 %s25, 1
        %s296 = scalar_lea.sflag [#allocation7], %s295
        %s297 = sand.u32 %s66, 1
        %s298 = smul.addr %s297, 64
        %s299 = scalar_lea.vmem [#allocation6], %s298
        %p300 = pneg %p79
        %p301 = pneg %p76
        %s302 = sand.u32 %s25, 1
        %s303 = scalar_lea.sflag [#allocation7], %s302
        %s304 = sand.u32 %s92, 1
        %s305 = smul.addr %s304, 16
        %s306 = scalar_lea.vmem [#allocation8], %s305
        %p307 = pneg %p105
        %p308 = pneg %p102
        %s309 = sand.u32 %s120, 1
        %s310 = scalar_lea.sflag [#allocation10], %s309
        %s311 = sand.u32 %s120, 1
        %s312 = smul.addr %s311, 32
        %s313 = scalar_lea.vmem [#allocation9], %s312
        %p314 = pneg %p133
        %p315 = pneg %p130
        %p316 = pneg %p161
        %p317 = pneg %p158
        %s318 = sand.u32 %s148, 1
        %s319 = scalar_lea.sflag [#allocation5], %s318
        %s320 = sand.u32 %s148, 1
        %s321 = smul.addr %s320, 8
        %s322 = scalar_lea.vmem [#allocation11], %s321
        %v323 = vld [vmem:[#allocation3] sm:$0xff]
        %v324 = vld [vmem:[#allocation3 + $0x8] sm:$0xff]
        %v325 = vld [vmem:[#allocation3 + $0x10] sm:$0xff]
        %v326 = vld [vmem:[#allocation3 + $0x18] sm:$0xff]
        %p327 = scmp.eq.s32.totalorder %s30, 0
        // Predicated region
        $region53: #{tpu_custom_call.1} parent=35 // pred_check
          %p328 = pneg %p327
        $region54: #{tpu_custom_call.1} parent=35 // pred_check_branch
          %330 = sbr.rel (%p328) target = $region56
        $region55: #{tpu_custom_call.1} parent=35 // pred_region
          %v331 = vld [vmem:[%s270] sm:$0xff]
          %v332 = vld [vmem:[%s270 + $0x8] sm:$0xff]
          %v333 = vld [vmem:[%s270 + $0x10] sm:$0xff]
          %v334 = vld [vmem:[%s270 + $0x18] sm:$0xff]
          %v335 = vld [vmem:[%s270 + $0x20] sm:$0xff]
          %v336 = vld [vmem:[%s270 + $0x28] sm:$0xff]
          %v337 = vld [vmem:[%s270 + $0x30] sm:$0xff]
          %v338 = vld [vmem:[%s270 + $0x38] sm:$0xff]
          %v339 = vld [vmem:[%s279] sm:$0xff]
          %v340 = vld [vmem:[%s279 + $0x8] sm:$0xff]
          %vm341 = vcmask 261120
          %v343 = vsel %vm341, %v323, 0
          %v346 = vsel %vm341, %v324, 0
          %v349 = vsel %vm341, %v325, 0
          %v352 = vsel %vm341, %v326, 0
          %354 = vmatprep.subr.mxu0 %v332
          %355 = vmatpush1.msra.mxu0 %v331
          %356 = vmatprep.subr.mxu0 %v334
          %357 = vmatpush1.msra.mxu0 %v333
          %358 = vmatprep.subr.mxu0 %v336
          %359 = vmatpush1.msra.mxu0 %v335
          %360 = vmatprep.subr.mxu0 %v338
          %361 = vmatpush1.msra.mxu0 %v337
          %362 = vmatprep.subr.mxu0 0.0
          %363 = vmatpush1.msra.mxu0 0.0
          %364 = vmatprep.subr.mxu0 0.0
          %365 = vmatpush1.msra.mxu0 0.0
          %366 = vmatprep.subr.mxu0 0.0
          %367 = vmatpush1.msra.mxu0 0.0
          %368 = vmatprep.subr.mxu0 0.0
          %369 = vmatpush1.msra.mxu0 0.0
          %370 = vmatprep.subr.mxu0 0.0
          %371 = vmatpush1.msra.mxu0 0.0
          %372 = vmatprep.subr.mxu0 0.0
          %373 = vmatpush1.msra.mxu0 0.0
          %374 = vmatprep.subr.mxu0 0.0
          %375 = vmatpush1.msra.mxu0 0.0
          %376 = vmatprep.subr.mxu0 0.0
          %377 = vmatpush1.msra.mxu0 0.0
          %378 = vmatprep.subr.mxu0 0.0
          %379 = vmatpush1.msra.mxu0 0.0
          %380 = vmatprep.subr.mxu0 0.0
          %381 = vmatpush1.msra.mxu0 0.0
          %382 = vmatprep.subr.mxu0 0.0
          %383 = vmatpush1.msra.mxu0 0.0
          %384 = vmatprep.subr.mxu0 0.0
          %385 = vmatpush1.msra.mxu0 0.0
          %386 = vmatprep.subr.mxu0 0.0
          %387 = vmatpush1.msra.mxu0 0.0
          %388 = vmatprep.subr.mxu0 0.0
          %389 = vmatpush1.msra.mxu0 0.0
          %390 = vmatprep.subr.mxu0 0.0
          %391 = vmatpush1.msra.mxu0 0.0
          %392 = vmatprep.subr.mxu0 0.0
          %393 = vmatpush1.msra.mxu0 0.0
          %394 = vmatprep.subr.mxu0 0.0
          %395 = vmatpush1.msra.mxu0 0.0
          %396 = vmatprep.subr.mxu0 0.0
          %397 = vmatpush1.msra.mxu0 0.0
          %398 = vmatprep.subr.mxu0 0.0
          %399 = vmatpush1.msra.mxu0 0.0
          %400 = vmatprep.subr.mxu0 0.0
          %401 = vmatpush1.msra.mxu0 0.0
          %402 = vmatprep.subr.mxu0 0.0
          %403 = vmatpush1.msra.mxu0 0.0
          %404 = vmatprep.subr.mxu0 0.0
          %405 = vmatpush1.msra.mxu0 0.0
          %406 = vmatprep.subr.mxu0 0.0
          %407 = vmatpush1.msra.mxu0 0.0
          %408 = vmatprep.subr.mxu0 0.0
          %409 = vmatpush1.msra.mxu0 0.0
          %410 = vmatprep.subr.mxu0 0.0
          %411 = vmatpush1.msra.mxu0 0.0
          %412 = vmatprep.subr.mxu0 0.0
          %413 = vmatpush1.msra.mxu0 0.0
          %414 = vmatprep.subr.mxu0 0.0
          %415 = vmatpush1.msra.mxu0 0.0
          %416 = vmatprep.subr.mxu0 0.0
          %417 = vmatpush1.msra.mxu0 0.0
          %418 = vmatprep.mubr.f32.mxu0 0.0
          %419 = vmatmul.mubr.f32.gmra.mrb[0].mxu0 %v343
          %v420 = vpop.f32.mrb[0].mxu0
          %v421 = vadd.f32 0.0, %v420
          %v422 = vpop.f32.mrb[0].mxu0
          %v423 = vadd.f32 0.0, %v422
          %424 = vmatprep.mubr.f32.mxu0 0.0
          %425 = vmatmul.mubr.f32.gmra.mrb[0].mxu0 %v346
          %v426 = vpop.f32.mrb[0].mxu0
          %v427 = vadd.f32 0.0, %v426
          %v428 = vpop.f32.mrb[0].mxu0
          %v429 = vadd.f32 0.0, %v428
          %430 = vmatprep.mubr.f32.mxu0 0.0
          %431 = vmatmul.mubr.f32.gmra.mrb[0].mxu0 %v349
          %v432 = vpop.f32.mrb[0].mxu0
          %v433 = vadd.f32 0.0, %v432
          %v434 = vpop.f32.mrb[0].mxu0
          %v435 = vadd.f32 0.0, %v434
          %436 = vmatprep.mubr.f32.mxu0 0.0
          %437 = vmatmul.mubr.f32.gmra.mrb[0].mxu0 %v352
          %v438 = vpop.f32.mrb[0].mxu0
          %v439 = vadd.f32 0.0, %v438
          %v440 = vpop.f32.mrb[0].mxu0
          %v441 = vadd.f32 0.0, %v440
          %442 = vdwg.mxu0
          %v443 = vmax.f32 %v421, 0.0
          %v444 = vmax.f32 %v423, 0.0
          %v445 = vmax.f32 %v427, 0.0
          %v446 = vmax.f32 %v429, 0.0
          %v447 = vmax.f32 %v433, 0.0
          %v448 = vmax.f32 %v435, 0.0
          %v449 = vmax.f32 %v439, 0.0
          %v450 = vmax.f32 %v441, 0.0
          %v451 = vadd.f32 %v443, 0.001
          %v452 = vadd.f32 %v444, 0.001
          %v453 = vadd.f32 %v445, 0.001
          %v454 = vadd.f32 %v446, 0.001
          %v455 = vadd.f32 %v447, 0.001
          %v456 = vadd.f32 %v448, 0.001
          %v457 = vadd.f32 %v449, 0.001
          %v458 = vadd.f32 %v450, 0.001
          %459 = vmatprep.subr.mxu0 %v340
          %460 = vmatpush1.xpose.msra.mxu0 %v339
          %461 = vmatprep.subr.mxu0 1.0
          %462 = vmatpush1.xpose.msra.mxu0 1.0
          %463 = vmatprep.subr.mxu0 0.0
          %464 = vmatpush1.xpose.msra.mxu0 0.0
          %465 = vmatprep.subr.mxu0 0.0
          %466 = vmatpush1.xpose.msra.mxu0 0.0
          %467 = vmatprep.subr.mxu0 0.0
          %468 = vmatpush1.xpose.msra.mxu0 0.0
          %469 = vmatprep.subr.mxu0 0.0
          %470 = vmatpush1.xpose.msra.mxu0 0.0
          %471 = vmatprep.subr.mxu0 0.0
          %472 = vmatpush1.xpose.msra.mxu0 0.0
          %473 = vmatprep.subr.mxu0 0.0
          %474 = vmatpush1.xpose.msra.mxu0 0.0
          %475 = vmatprep.subr.mxu0 0.0
          %476 = vmatpush1.xpose.msra.mxu0 0.0
          %477 = vmatprep.subr.mxu0 0.0
          %478 = vmatpush1.xpose.msra.mxu0 0.0
          %479 = vmatprep.subr.mxu0 0.0
          %480 = vmatpush1.xpose.msra.mxu0 0.0
          %481 = vmatprep.subr.mxu0 0.0
          %482 = vmatpush1.xpose.msra.mxu0 0.0
          %483 = vmatprep.subr.mxu0 0.0
          %484 = vmatpush1.xpose.msra.mxu0 0.0
          %485 = vmatprep.subr.mxu0 0.0
          %486 = vmatpush1.xpose.msra.mxu0 0.0
          %487 = vmatprep.subr.mxu0 0.0
          %488 = vmatpush1.xpose.msra.mxu0 0.0
          %489 = vmatprep.subr.mxu0 0.0
          %490 = vmatpush1.xpose.msra.mxu0 0.0
          %491 = vmatprep.subr.mxu0 0.0
          %492 = vmatpush1.xpose.msra.mxu0 0.0
          %493 = vmatprep.subr.mxu0 0.0
          %494 = vmatpush1.xpose.msra.mxu0 0.0
          %495 = vmatprep.subr.mxu0 0.0
          %496 = vmatpush1.xpose.msra.mxu0 0.0
          %497 = vmatprep.subr.mxu0 0.0
          %498 = vmatpush1.xpose.msra.mxu0 0.0
          %499 = vmatprep.subr.mxu0 0.0
          %500 = vmatpush1.xpose.msra.mxu0 0.0
          %501 = vmatprep.subr.mxu0 0.0
          %502 = vmatpush1.xpose.msra.mxu0 0.0
          %503 = vmatprep.subr.mxu0 0.0
          %504 = vmatpush1.xpose.msra.mxu0 0.0
          %505 = vmatprep.subr.mxu0 0.0
          %506 = vmatpush1.xpose.msra.mxu0 0.0
          %507 = vmatprep.subr.mxu0 0.0
          %508 = vmatpush1.xpose.msra.mxu0 0.0
          %509 = vmatprep.subr.mxu0 0.0
          %510 = vmatpush1.xpose.msra.mxu0 0.0
          %511 = vmatprep.subr.mxu0 0.0
          %512 = vmatpush1.xpose.msra.mxu0 0.0
          %513 = vmatprep.subr.mxu0 0.0
          %514 = vmatpush1.xpose.msra.mxu0 0.0
          %515 = vmatprep.subr.mxu0 0.0
          %516 = vmatpush1.xpose.msra.mxu0 0.0
          %517 = vmatprep.subr.mxu0 0.0
          %518 = vmatpush1.xpose.msra.mxu0 0.0
          %519 = vmatprep.subr.mxu0 0.0
          %520 = vmatpush1.xpose.msra.mxu0 0.0
          %521 = vmatprep.subr.mxu0 0.0
          %522 = vmatpush1.xpose.msra.mxu0 0.0
          %523 = vmatprep.mubr.f32.mxu0 %v452
          %524 = vmatmul.mubr.f32.gmra.mrb[0].mxu0 %v451
          %v525 = vpop.f32.mrb[0].mxu0
          %v526 = vadd.f32 0.0, %v525
          %v527 = vpop.f32.mrb[0].mxu0
          %528 = vmatprep.mubr.f32.mxu0 %v454
          %529 = vmatmul.mubr.f32.gmra.mrb[0].mxu0 %v453
          %v530 = vpop.f32.mrb[0].mxu0
          %v531 = vadd.f32 0.0, %v530
          %v532 = vpop.f32.mrb[0].mxu0
          %533 = vmatprep.mubr.f32.mxu0 %v456
          %534 = vmatmul.mubr.f32.gmra.mrb[0].mxu0 %v455
          %v535 = vpop.f32.mrb[0].mxu0
          %v536 = vadd.f32 0.0, %v535
          %v537 = vpop.f32.mrb[0].mxu0
          %538 = vmatprep.mubr.f32.mxu0 %v458
          %539 = vmatmul.mubr.f32.gmra.mrb[0].mxu0 %v457
          %v540 = vpop.f32.mrb[0].mxu0
          %v541 = vadd.f32 0.0, %v540
          %v542 = vpop.f32.mrb[0].mxu0
          %543 = vdwg.mxu0
          %vm544 = vcmask 72704
          %545 = vst.msk [vmem:[#allocation2] sm:$0xff] %vm544, %v526
          %546 = vst.msk [vmem:[#allocation2 + $0x8] sm:$0xff] %vm544, %v531
          %547 = vst.msk [vmem:[#allocation2 + $0x10] sm:$0xff] %vm544, %v536
          %548 = vst.msk [vmem:[#allocation2 + $0x18] sm:$0xff] %vm544, %v541
        $region56: #{tpu_custom_call.1} parent=35 // pred_fallthru
          _
        %v549 = vld [vmem:[%s288] sm:$0xff]
        %v550 = vld [vmem:[%s288 + $0x8] sm:$0xff]
        %v551 = vld [vmem:[%s288 + $0x10] sm:$0xff]
        %v552 = vld [vmem:[%s288 + $0x18] sm:$0xff]
        %vm553 = vcmask 261120
        %v555 = vsel %vm553, %v323, 0
        %v558 = vsel %vm553, %v324, 0
        %v561 = vsel %vm553, %v325, 0
        %v564 = vsel %vm553, %v326, 0
        %566 = vmatprep.subr.mxu0 0.0
        %567 = vmatpush1.msra.mxu0 %v549
        %568 = vmatprep.subr.mxu0 0.0
        %569 = vmatpush1.msra.mxu0 %v550
        %570 = vmatprep.subr.mxu0 0.0
        %571 = vmatpush1.msra.mxu0 %v551
        %572 = vmatprep.subr.mxu0 0.0
        %573 = vmatpush1.msra.mxu0 %v552
        %574 = vmatprep.subr.mxu0 0.0
        %575 = vmatpush1.msra.mxu0 0.0
        %576 = vmatprep.subr.mxu0 0.0
        %577 = vmatpush1.msra.mxu0 0.0
        %578 = vmatprep.subr.mxu0 0.0
        %579 = vmatpush1.msra.mxu0 0.0
        %580 = vmatprep.subr.mxu0 0.0
        %581 = vmatpush1.msra.mxu0 0.0
        %582 = vmatprep.subr.mxu0 0.0
        %583 = vmatpush1.msra.mxu0 0.0
        %584 = vmatprep.subr.mxu0 0.0
        %585 = vmatpush1.msra.mxu0 0.0
        %586 = vmatprep.subr.mxu0 0.0
        %587 = vmatpush1.msra.mxu0 0.0
        %588 = vmatprep.subr.mxu0 0.0
        %589 = vmatpush1.msra.mxu0 0.0
        %590 = vmatprep.subr.mxu0 0.0
        %591 = vmatpush1.msra.mxu0 0.0
        %592 = vmatprep.subr.mxu0 0.0
        %593 = vmatpush1.msra.mxu0 0.0
        %594 = vmatprep.subr.mxu0 0.0
        %595 = vmatpush1.msra.mxu0 0.0
        %596 = vmatprep.subr.mxu0 0.0
        %597 = vmatpush1.msra.mxu0 0.0
        %598 = vmatprep.subr.mxu0 0.0
        %599 = vmatpush1.msra.mxu0 0.0
        %600 = vmatprep.subr.mxu0 0.0
        %601 = vmatpush1.msra.mxu0 0.0
        %602 = vmatprep.subr.mxu0 0.0
        %603 = vmatpush1.msra.mxu0 0.0
        %604 = vmatprep.subr.mxu0 0.0
        %605 = vmatpush1.msra.mxu0 0.0
        %606 = vmatprep.subr.mxu0 0.0
        %607 = vmatpush1.msra.mxu0 0.0
        %608 = vmatprep.subr.mxu0 0.0
        %609 = vmatpush1.msra.mxu0 0.0
        %610 = vmatprep.subr.mxu0 0.0
        %611 = vmatpush1.msra.mxu0 0.0
        %612 = vmatprep.subr.mxu0 0.0
        %613 = vmatpush1.msra.mxu0 0.0
        %614 = vmatprep.subr.mxu0 0.0
        %615 = vmatpush1.msra.mxu0 0.0
        %616 = vmatprep.subr.mxu0 0.0
        %617 = vmatpush1.msra.mxu0 0.0
        %618 = vmatprep.subr.mxu0 0.0
        %619 = vmatpush1.msra.mxu0 0.0
        %620 = vmatprep.subr.mxu0 0.0
        %621 = vmatpush1.msra.mxu0 0.0
        %622 = vmatprep.subr.mxu0 0.0
        %623 = vmatpush1.msra.mxu0 0.0
        %624 = vmatprep.subr.mxu0 0.0
        %625 = vmatpush1.msra.mxu0 0.0
        %626 = vmatprep.subr.mxu0 0.0
        %627 = vmatpush1.msra.mxu0 0.0
        %628 = vmatprep.subr.mxu0 0.0
        %629 = vmatpush1.msra.mxu0 0.0
        %630 = vmatprep.mubr.f32.mxu0 0.0
        %631 = vmatmul.mubr.f32.gmra.mrb[0].mxu0 %v555
        %v632 = vpop.f32.mrb[0].mxu0
        %v633 = vadd.f32 0.0, %v632
        %v634 = vpop.f32.mrb[0].mxu0
        %635 = vmatprep.mubr.f32.mxu0 0.0
        %636 = vmatmul.mubr.f32.gmra.mrb[0].mxu0 %v558
        %v637 = vpop.f32.mrb[0].mxu0
        %v638 = vadd.f32 0.0, %v637
        %v639 = vpop.f32.mrb[0].mxu0
        %640 = vmatprep.mubr.f32.mxu0 0.0
        %641 = vmatmul.mubr.f32.gmra.mrb[0].mxu0 %v561
        %v642 = vpop.f32.mrb[0].mxu0
        %v643 = vadd.f32 0.0, %v642
        %v644 = vpop.f32.mrb[0].mxu0
        %645 = vmatprep.mubr.f32.mxu0 0.0
        %646 = vmatmul.mubr.f32.gmra.mrb[0].mxu0 %v564
        %v647 = vpop.f32.mrb[0].mxu0
        %v648 = vadd.f32 0.0, %v647
        %v649 = vpop.f32.mrb[0].mxu0
        %650 = vdwg.mxu0
        %v651 = vmax.f32 %v633, 0.0
        %v652 = vmax.f32 %v638, 0.0
        %v653 = vmax.f32 %v643, 0.0
        %v654 = vmax.f32 %v648, 0.0
        %v655 = vadd.f32 %v651, 0.001
        %v656 = vadd.f32 %v652, 0.001
        %v657 = vadd.f32 %v653, 0.001
        %v658 = vadd.f32 %v654, 0.001
        %v659 = vld [vmem:[#allocation2] sm:$0xff]
        %v660 = vld [vmem:[#allocation2 + $0x8] sm:$0xff]
        %v661 = vld [vmem:[#allocation2 + $0x10] sm:$0xff]
        %v662 = vld [vmem:[#allocation2 + $0x18] sm:$0xff]
        %663 = vxpose.xlu0.b32.start [1/16] %v659, 128
        %664 = vxpose.xlu0.b32.cont [2/16] %v660, 128
        %665 = vxpose.xlu0.b32.cont [3/16] %v661, 128
        %666 = vxpose.xlu0.b32.cont [4/16] %v662, 128
        %667 = vxpose.xlu0.b32.cont [5/16] 0.0, 128
        %668 = vxpose.xlu0.b32.cont [6/16] 0.0, 128
        %669 = vxpose.xlu0.b32.cont [7/16] 0.0, 128
        %670 = vxpose.xlu0.b32.cont [8/16] 0.0, 128
        %671 = vxpose.xlu0.b32.cont [9/16] 0.0, 128
        %672 = vxpose.xlu0.b32.cont [10/16] 0.0, 128
        %673 = vxpose.xlu0.b32.cont [11/16] 0.0, 128
        %674 = vxpose.xlu0.b32.cont [12/16] 0.0, 128
        %675 = vxpose.xlu0.b32.cont [13/16] 0.0, 128
        %676 = vxpose.xlu0.b32.cont [14/16] 0.0, 128
        %677 = vxpose.xlu0.b32.cont [15/16] 0.0, 128
        %678 = vxpose.xlu0.b32.end [16/16] 0.0, 128
        %v679 = vpop.trf.xlu0
        %v680 = vpop.trf.xlu0
        %v681 = vpop.trf.xlu0
        %v682 = vpop.trf.xlu0
        %v683 = vpop.trf.xlu0
        %v684 = vpop.trf.xlu0
        %v685 = vpop.trf.xlu0
        %v686 = vpop.trf.xlu0
        %v687 = vpop.trf.xlu0
        %v688 = vpop.trf.xlu0
        %v689 = vpop.trf.xlu0
        %v690 = vpop.trf.xlu0
        %v691 = vpop.trf.xlu0
        %v692 = vpop.trf.xlu0
        %v693 = vpop.trf.xlu0
        %v694 = vpop.trf.xlu0
        %v696 = vsel %vm553, %v679, 0
        %v699 = vsel %vm553, %v680, 0
        %701 = vmatprep.subr.mxu0 0.0
        %702 = vmatpush1.msra.mxu0 %v655
        %703 = vmatprep.subr.mxu0 0.0
        %704 = vmatpush1.msra.mxu0 %v656
        %705 = vmatprep.subr.mxu0 0.0
        %706 = vmatpush1.msra.mxu0 %v657
        %707 = vmatprep.subr.mxu0 0.0
        %708 = vmatpush1.msra.mxu0 %v658
        %709 = vmatprep.subr.mxu0 0.0
        %710 = vmatpush1.msra.mxu0 0.0
        %711 = vmatprep.subr.mxu0 0.0
        %712 = vmatpush1.msra.mxu0 0.0
        %713 = vmatprep.subr.mxu0 0.0
        %714 = vmatpush1.msra.mxu0 0.0
        %715 = vmatprep.subr.mxu0 0.0
        %716 = vmatpush1.msra.mxu0 0.0
        %717 = vmatprep.subr.mxu0 0.0
        %718 = vmatpush1.msra.mxu0 0.0
        %719 = vmatprep.subr.mxu0 0.0
        %720 = vmatpush1.msra.mxu0 0.0
        %721 = vmatprep.subr.mxu0 0.0
        %722 = vmatpush1.msra.mxu0 0.0
        %723 = vmatprep.subr.mxu0 0.0
        %724 = vmatpush1.msra.mxu0 0.0
        %725 = vmatprep.subr.mxu0 0.0
        %726 = vmatpush1.msra.mxu0 0.0
        %727 = vmatprep.subr.mxu0 0.0
        %728 = vmatpush1.msra.mxu0 0.0
        %729 = vmatprep.subr.mxu0 0.0
        %730 = vmatpush1.msra.mxu0 0.0
        %731 = vmatprep.subr.mxu0 0.0
        %732 = vmatpush1.msra.mxu0 0.0
        %733 = vmatprep.subr.mxu0 0.0
        %734 = vmatpush1.msra.mxu0 0.0
        %735 = vmatprep.subr.mxu0 0.0
        %736 = vmatpush1.msra.mxu0 0.0
        %737 = vmatprep.subr.mxu0 0.0
        %738 = vmatpush1.msra.mxu0 0.0
        %739 = vmatprep.subr.mxu0 0.0
        %740 = vmatpush1.msra.mxu0 0.0
        %741 = vmatprep.subr.mxu0 0.0
        %742 = vmatpush1.msra.mxu0 0.0
        %743 = vmatprep.subr.mxu0 0.0
        %744 = vmatpush1.msra.mxu0 0.0
        %745 = vmatprep.subr.mxu0 0.0
        %746 = vmatpush1.msra.mxu0 0.0
        %747 = vmatprep.subr.mxu0 0.0
        %748 = vmatpush1.msra.mxu0 0.0
        %749 = vmatprep.subr.mxu0 0.0
        %750 = vmatpush1.msra.mxu0 0.0
        %751 = vmatprep.subr.mxu0 0.0
        %752 = vmatpush1.msra.mxu0 0.0
        %753 = vmatprep.subr.mxu0 0.0
        %754 = vmatpush1.msra.mxu0 0.0
        %755 = vmatprep.subr.mxu0 0.0
        %756 = vmatpush1.msra.mxu0 0.0
        %757 = vmatprep.subr.mxu0 0.0
        %758 = vmatpush1.msra.mxu0 0.0
        %759 = vmatprep.subr.mxu0 0.0
        %760 = vmatpush1.msra.mxu0 0.0
        %761 = vmatprep.subr.mxu0 0.0
        %762 = vmatpush1.msra.mxu0 0.0
        %763 = vmatprep.subr.mxu0 0.0
        %764 = vmatpush1.msra.mxu0 0.0
        %765 = vmatprep.mubr.f32.mxu0 0.0
        %766 = vmatmul.mubr.f32.gmra.mrb[0].mxu0 %v696
        %v767 = vpop.f32.mrb[0].mxu0
        %v768 = vadd.f32 0.0, %v767
        %v769 = vpop.f32.mrb[0].mxu0
        %770 = vmatprep.mubr.f32.mxu0 0.0
        %771 = vmatmul.mubr.f32.gmra.mrb[0].mxu0 %v699
        %v772 = vpop.f32.mrb[0].mxu0
        %v773 = vadd.f32 0.0, %v772
        %v774 = vpop.f32.mrb[0].mxu0
        %775 = vdwg.mxu0
        %v776 = vrcp.pop %v773
        %v777 = vmul.f32 1.0, %v776
        %v778 = vlaneseq
        %v779 = vshrl.u32 %v778, 7
        %v780 = vsub.s32 0, %v779
        %v781 = vrot.slane %v777, %v780
        %v782 = vmul.f32 %v768, %v781
        %783 = vst [vmem:[%s322] sm:$0xff] %v782
        %s784 = sand.u32 %s148, 1
        %s785 = scalar_lea.sflag [#allocation5], %s784
        %s786 = sand.u32 %s148, 1
        %s787 = smul.addr %s786, 8
        %s788 = scalar_lea.vmem [#allocation11], %s787
        // Predicated region
        $region57: #{tpu_custom_call.1} parent=35 // pred_check
          %p789 = pneg %p158
        $region58: #{tpu_custom_call.1} parent=35 // pred_check_branch
          %791 = sbr.rel (%p789) target = $region60
        $region59: #{tpu_custom_call.1} parent=35 // pred_region
          %s793 = ssub.s32 128, 128
          %794 = vsyncadd %s785, %s793
          %s795 = smul.addr %s29, 2
          %s796 = sadd.s32 %s30, %s795
          %s797 = smul.addr %s796, 128
          %s798 = scalar_lea.hbm %s4, %s797
          %s800 = sshll.u32 %s788, 4
          %s801 = int_to_ptr.vmem [resolvable:$true] %s800
          %803 = dma.vmem_to_hbm [thread:$0]  %s801, 128, %s798, %s785
        $region60: #{tpu_custom_call.1} parent=35 // pred_fallthru
          _
      $region36: #{tpu_custom_call.1} parent=5 // pred_fallthru
        _
      %p804 = scmp.le.s32.totalorder 2, %s20
      // Predicated region
      $region61: #{tpu_custom_call.1} parent=5 // pred_check
        %p805 = pneg %p804
      $region62: #{tpu_custom_call.1} parent=5 // pred_check_branch
        %807 = sbr.rel (%p805) target = $region64
      $region63: #{tpu_custom_call.1} parent=5 // pred_region
        %s808 = ssub.s32 %s20, 2
        // Predicated region
        $region65: #{tpu_custom_call.1} parent=63 // pred_check
          %p809 = pneg %p164
        $region66: #{tpu_custom_call.1} parent=63 // pred_check_branch
          %811 = sbr.rel (%p809) target = $region68
        $region67: #{tpu_custom_call.1} parent=63 // pred_region
          %s812 = sand.u32 %s149, 1
          %s813 = scalar_lea.sflag [#allocation5], %s812
          %s814 = sand.u32 %s149, 1
          %s815 = smul.addr %s814, 8
          %s816 = scalar_lea.vmem [#allocation11], %s815
          %817 = dma.done %s813, 128
        $region68: #{tpu_custom_call.1} parent=63 // pred_fallthru
          _
      $region64: #{tpu_custom_call.1} parent=5 // pred_fallthru
        _
    $region6: #{tpu_custom_call.1} parent=1 // loop_footer
      %s24 = sadd.s32 1, %s20
    $region7: #{tpu_custom_call.1} parent=1 // loop_footer_branch
      %19 = sbr.rel target = $region3
    $region8: #{tpu_custom_call.1} parent=1 // loop_exit
      _
    %818 = vsyncpa [#allocation4], 1
    %s819 = scalar_lea.sflag [#allocation4], 1
    %820 = vsyncpa %s819, 1
    %821 = vsyncpa [#allocation7], 1
    %s822 = scalar_lea.sflag [#allocation7], 1
    %823 = vsyncpa %s822, 1
    %824 = vsyncpa [#allocation10], 1
    %s825 = scalar_lea.sflag [#allocation10], 1
    %826 = vsyncpa %s825, 1
    %827 = vsyncpa [#allocation5], 1
    %s828 = scalar_lea.sflag [#allocation5], 1
    %829 = vsyncpa %s828, 1

</llo_original>
